<compile_context>
chip_gen: v6e
topology: v6e:2x2x1
jax: 0.10.0
libtpu: 0.0.40
codegen_flags: <defaults>
</compile_context>

<pallas_src>
import functools

import jax
import jax.numpy as jnp
from jax.experimental import pallas as pl
from jax.experimental.pallas import tpu as pltpu


# ----------------------------------------------------------------------------
# Tiling / compiler-parameter helpers
# ----------------------------------------------------------------------------
_TARGET_BLOCK_BYTES = 2 << 20   # ~2 MiB per x tile: good DMA/compute overlap
_VMEM_LIMIT_BYTES = 32 << 20    # explicit budget, safe on v5e/v6e/v7x


def _pick_tiles(B, D, itemsize):
    """Pick (tb, td) so one x block is ~2 MiB, lane-dense, (8,128)-legal."""
    # Lane (last-dim) tile: multiple of 128, or the full D when small/unaligned.
    if D % 128 == 0:
        td = min(D, 2048)
    else:
        td = D
    # Sublane (batch) tile: multiple of 8 sized to the target block bytes,
    # or the full B when B is small.
    rows = (_TARGET_BLOCK_BYTES // max(td * itemsize, 1)) // 8 * 8
    rows = max(rows, 8)
    tb = B if rows >= B else rows
    return tb, td


def _compiler_params():
    return pltpu.CompilerParams(
        dimension_semantics=("parallel", "parallel"),
        vmem_limit_bytes=_VMEM_LIMIT_BYTES,
    )


# ----------------------------------------------------------------------------
# Kernels
# ----------------------------------------------------------------------------
def _mdropout_eval_kernel(x_ref, mask_ref, o_ref):
    # x_ref: (tb, td); mask_ref: (1, td) float32 already scaled by 1/(1-p).
    # Compute in f32, cast once at the store.
    o_ref[...] = (x_ref[...].astype(jnp.float32) * mask_ref[...]).astype(o_ref.dtype)


def _mdropout_train_kernel(x_ref, bits_ref, o_ref, *, threshold, scale):
    # keep <=> bits < keep_prob * 2^32  (integer compare, no int->float cast)
    keep = bits_ref[...] < jnp.uint32(threshold)
    keep_scale = jnp.where(keep, jnp.float32(scale), jnp.float32(0.0))
    o_ref[...] = (x_ref[...].astype(jnp.float32) * keep_scale).astype(o_ref.dtype)


# ----------------------------------------------------------------------------
# Wrappers (pallas_call plumbing)
# ----------------------------------------------------------------------------
def mdropout_eval(x, mask, p):
    """Eval-mode forward: x * mask.view(1,-1) / (1-p)."""
    B, D = x.shape
    itemsize = jnp.dtype(x.dtype).itemsize
    tb, td = _pick_tiles(B, D, itemsize)
    scale = 1.0 / (1.0 - float(p))
    # Fold the scale into the tiny (1, D) mask on the host (O(D), not O(B*D)).
    mask2d = (mask.astype(jnp.float32) * jnp.float32(scale)).reshape(1, D)
    grid = (pl.cdiv(B, tb), pl.cdiv(D, td))
    return pl.pallas_call(
        _mdropout_eval_kernel,
        out_shape=jax.ShapeDtypeStruct((B, D), x.dtype),
        grid=grid,
        in_specs=[
            pl.BlockSpec((tb, td), lambda i, j: (i, j)),
            pl.BlockSpec((1, td), lambda i, j: (0, j)),
        ],
        out_specs=pl.BlockSpec((tb, td), lambda i, j: (i, j)),
        compiler_params=_compiler_params(),
    )(x, mask2d)


def mdropout_train(x, p, key):
    """Training-mode forward: F.dropout(x, p, training=True)."""
    p = float(p)
    if p <= 0.0:
        return x
    B, D = x.shape
    keep_prob = 1.0 - p
    itemsize = jnp.dtype(x.dtype).itemsize
    tb, td = _pick_tiles(B, D, itemsize)
    # Random bits generated once with plain JAX (runs everywhere, including
    # interpret mode); the Bernoulli draw is an in-kernel integer compare.
    # TODO(synk): on real TPU hardware the extra bits read could be removed by
    # switching to the in-kernel HW PRNG (pltpu.prng_seed/prng_random_bits),
    # which has no CPU/interpret lowering.
    bits = jax.random.bits(key, (B, D), dtype=jnp.uint32)
    threshold = min(int(round(keep_prob * 2.0**32)), 2**32 - 1)
    kernel = functools.partial(
        _mdropout_train_kernel, threshold=threshold, scale=1.0 / keep_prob)
    grid = (pl.cdiv(B, tb), pl.cdiv(D, td))
    return pl.pallas_call(
        kernel,
        out_shape=jax.ShapeDtypeStruct((B, D), x.dtype),
        grid=grid,
        in_specs=[
            pl.BlockSpec((tb, td), lambda i, j: (i, j)),
            pl.BlockSpec((tb, td), lambda i, j: (i, j)),
        ],
        out_specs=pl.BlockSpec((tb, td), lambda i, j: (i, j)),
        compiler_params=_compiler_params(),
    )(x, bits)


class MDropoutPallas:
    """JAX/Pallas port of the PyTorch MDropout module (functional, not inplace)."""

    def __init__(self, dim, p, inplace=False):
        self.dim = dim
        self.p = p
        self.inplace = inplace  # no-op in JAX (functional)
        # register_buffer('mask', torch.ones(dim, dtype=torch.long))
        self.mask = jnp.ones((dim,), dtype=jnp.int32)

    def sample(self, key):
        # mask.bernoulli_(1 - p)  (plain-JAX glue; not the hot path)
        self.mask = jax.random.bernoulli(
            key, 1.0 - self.p, (self.dim,)
        ).astype(jnp.int32)

    def __call__(self, x, training=False, key=None):
        if training:
            if key is None:
                key = jax.random.PRNGKey(0)
            return mdropout_train(x, self.p, key)
        return mdropout_eval(x, self.mask, self.p)


# ----------------------------------------------------------------------------
# Main
# ----------------------------------------------------------------------------
if __name__ == "__main__":
    key = jax.random.PRNGKey(0)
    k_x, k_mask, k_drop = jax.random.split(key, 3)

    B, D = 8, 128          # small [batch, dim] input
    P = 0.3

    x = jax.random.normal(k_x, (B, D), dtype=jnp.float32)

    module = MDropoutPallas(dim=D, p=P)

    # --- eval path with the default all-ones mask ---
    out_eval = module(x, training=False)
    ref_eval = x * module.mask.astype(jnp.float32).reshape(1, -1) / (1.0 - P)
    jax.block_until_ready(out_eval)
    assert out_eval.shape == (B, D)
    assert jnp.allclose(out_eval, ref_eval, atol=1e-5, rtol=1e-5)

    # --- eval path after sample() (non-trivial mask) ---
    module.sample(k_mask)
    out_sampled = module(x, training=False)
    ref_sampled = x * module.mask.astype(jnp.float32).reshape(1, -1) / (1.0 - P)
    jax.block_until_ready(out_sampled)
    assert jnp.allclose(out_sampled, ref_sampled, atol=1e-5, rtol=1e-5)

    # --- training path (random dropout, Bernoulli(1-p) keep + 1/(1-p) scale) ---
    out_train = module(x, training=True, key=k_drop)
    jax.block_until_ready(out_train)
    scaled = x / (1.0 - P)
    ok = jnp.logical_or(
        jnp.isclose(out_train, 0.0),
        jnp.isclose(out_train, scaled, atol=1e-5, rtol=1e-5),
    )
    assert bool(jnp.all(ok))
    n_dropped = int(jnp.sum(out_train == 0.0))
    assert 0 < n_dropped < B * D  # some elements dropped, some kept

    print("KERNEL_OK")
</pallas_src>

<mosaic_0001>
module attributes {stable_mosaic.version = 11 : i64} {
  func.func @_mdropout_eval_kernel(%arg0: i32, %arg1: i32, %arg2: memref<8x128xf32, #tpu.memory_space<vmem>>, %arg3: memref<1x128xf32, #tpu.memory_space<vmem>>, %arg4: memref<8x128xf32, #tpu.memory_space<vmem>>) attributes {dimension_semantics = [#tpu.dimension_semantics<parallel>, #tpu.dimension_semantics<parallel>], iteration_bounds = array<i64: 1, 1>, scalar_prefetch = 0 : i64, scratch_operands = 0 : i64, tpu.core_type = #tpu.core_type<tc>, window_params = [{transform_indices = @transform_0, window_bounds = array<i64: 8, 128>}, {transform_indices = @transform_1, window_bounds = array<i64: 1, 128>}, {transform_indices = @transform_2, window_bounds = array<i64: 8, 128>}]} {
    %c0 = arith.constant 0 : index
    %c0_0 = arith.constant 0 : index
    %0 = vector.load %arg2[%c0, %c0_0] : memref<8x128xf32, #tpu.memory_space<vmem>>, vector<8x128xf32>
    %c0_1 = arith.constant 0 : index
    %c0_2 = arith.constant 0 : index
    %1 = vector.load %arg3[%c0_1, %c0_2] : memref<1x128xf32, #tpu.memory_space<vmem>>, vector<1x128xf32>
    %2 = vector.broadcast %1 : vector<1x128xf32> to vector<8x128xf32>
    %3 = arith.mulf %0, %2 : vector<8x128xf32>
    %c0_3 = arith.constant 0 : index
    %c0_4 = arith.constant 0 : index
    %4 = vector.load %arg4[%c0_3, %c0_4] : memref<8x128xf32, #tpu.memory_space<vmem>>, vector<8x128xf32>
    tpu.vector_store %arg4[%c0_3, %c0_4], %3 {strides = array<i32>} : memref<8x128xf32, #tpu.memory_space<vmem>>, vector<8x128xf32>,
    return
  }
  func.func @transform_0(%arg0: i32, %arg1: i32) -> (i32, i32) {
    %c0_i32 = arith.constant 0 : i32
    return %arg0, %arg1 : i32, i32
  }
  func.func @transform_1(%arg0: i32, %arg1: i32) -> (i32, i32) {
    %c0_i32 = arith.constant 0 : i32
    %c0_i32_0 = arith.constant 0 : i32
    return %c0_i32, %arg1 : i32, i32
  }
  func.func @transform_2(%arg0: i32, %arg1: i32) -> (i32, i32) {
    %c0_i32 = arith.constant 0 : i32
    return %arg0, %arg1 : i32, i32
  }
}

</mosaic_0001>

<llo_original>
// kernel: tpu_custom_call.1
$region0: #{tpu_custom_call.1}
  #allocation0 [shape = 'u32[]', space=smem, size = 0x4, offset = 0x4, fixed_abs, tag = 'smem constant byte address 0x4 - core index']
  #allocation1 [shape = 'u32[144,128]{1,0:T(1,128)}', space=vmem, size = 0x12000, scoped, tag = 'internal scratch']
  %s0 = inlined_call_operand.hbm [shape: f32[8,128], index: 0, kind: input, shape index: {}]
  %s1 = inlined_call_operand.vmem [shape: f32[1,128], index: 1, kind: input, shape index: {}]
  %s2 = inlined_call_operand.hbm [shape: f32[8,128], index: 2, kind: output, shape index: {}]
  %s3 = sld [smem:[#allocation0]]
  $region22: #{tpu_custom_call.1} parent=0
    _
  %s5 = ssub.s32 1, %s3
  %s6 = scalar_select 0, %s5, %s3
  $region1: #{tpu_custom_call.1} parent=0
    #allocation2 [shape = 'u8[4096]{0}', space=vmem, size = 0x1000, scoped, tag = 'input window, operand 0, single buffered']
    #allocation3 [shape = 's32[1]{0}', space=sflag, size = 0x4, scoped, tag = 'scoped memory for tpu_custom_call.1']
    #allocation4 [shape = 's32[1]{0}', space=sflag, size = 0x4, scoped, tag = 'scoped memory for tpu_custom_call.1']
    #allocation5 [shape = 'u8[4096]{0}', space=vmem, size = 0x1000, scoped, tag = 'output window, operand 0, single buffered']
    %7 = vsyncpa [#allocation3], 0
    %8 = vsyncpa [#allocation4], 0
    // Predicated region
    $region2: #{tpu_custom_call.1} parent=1 // pred_check
      _
    $region3: #{tpu_custom_call.1} parent=1 // pred_check_branch
      %10 = sbr.rel (0) target = $region5
    $region4: #{tpu_custom_call.1} parent=1 // pred_region
      %s12 = ssub.s32 128, 128
      %13 = vsyncadd [#allocation3], %s12
      %s15 = sshll.u32 [#allocation2], 4
      %s16 = int_to_ptr.vmem [resolvable:$true] %s15
      %18 = dma.hbm_to_vmem [thread:$0]  %s0, 128, %s16, [#allocation3]
    $region5: #{tpu_custom_call.1} parent=1 // pred_fallthru
      _
    // Predicated region
    $region6: #{tpu_custom_call.1} parent=1 // pred_check
      _
    $region7: #{tpu_custom_call.1} parent=1 // pred_check_branch
      %20 = sbr.rel (0) target = $region9
    $region8: #{tpu_custom_call.1} parent=1 // pred_region
      _
    $region9: #{tpu_custom_call.1} parent=1 // pred_fallthru
      _
    // Predicated region
    $region10: #{tpu_custom_call.1} parent=1 // pred_check
      _
    $region11: #{tpu_custom_call.1} parent=1 // pred_check_branch
      %22 = sbr.rel (0) target = $region13
    $region12: #{tpu_custom_call.1} parent=1 // pred_region
      %23 = dma.done [#allocation3], 128
    $region13: #{tpu_custom_call.1} parent=1 // pred_fallthru
      _
    %v24 = vld [vmem:[#allocation2] sm:$0xff]
    %v25 = vld [vmem:[%s1] sm:$0x1]
    %v27 = vlaneseq
    %v28 = vshrl.u32 %v27, 7
    %v29 = vsub.s32 0, %v28
    %v30 = vrot.slane %v25, %v29
    %v32 = vmul.f32 %v24, %v30
    %33 = vst [vmem:[#allocation5] sm:$0xff] %v32
    // Predicated region
    $region14: #{tpu_custom_call.1} parent=1 // pred_check
      _
    $region15: #{tpu_custom_call.1} parent=1 // pred_check_branch
      %35 = sbr.rel (0) target = $region17
    $region16: #{tpu_custom_call.1} parent=1 // pred_region
      %s37 = ssub.s32 128, 128
      %38 = vsyncadd [#allocation4], %s37
      %s40 = sshll.u32 [#allocation5], 4
      %s41 = int_to_ptr.vmem [resolvable:$true] %s40
      %43 = dma.vmem_to_hbm [thread:$0]  %s41, 128, %s2, [#allocation4]
    $region17: #{tpu_custom_call.1} parent=1 // pred_fallthru
      _
    // Predicated region
    $region18: #{tpu_custom_call.1} parent=1 // pred_check
      _
    $region19: #{tpu_custom_call.1} parent=1 // pred_check_branch
      %45 = sbr.rel (0) target = $region21
    $region20: #{tpu_custom_call.1} parent=1 // pred_region
      %46 = dma.done [#allocation4], 128
    $region21: #{tpu_custom_call.1} parent=1 // pred_fallthru
      _
    %47 = vsyncpa [#allocation3], 1
    %48 = vsyncpa [#allocation4], 1

</llo_original>
